<compile_context>
chip_gen: v6e
topology: v6e:2x2x1
jax: 0.10.0
libtpu: 0.0.40
codegen_flags: <defaults>
</compile_context>

<pallas_src>
import jax
import jax.numpy as jnp
from jax import lax
from jax.experimental import pallas as pl
from jax.experimental.pallas import tpu as pltpu

B = 2                 # real batch
B_PAD = 8             # padded to one full sublane (dense VPU/XLU layout)
S = 8                 # prompt length
D = 128               # hidden size (lane-aligned stand-in for Moondream hidden)
V = 2000              # synthetic vocab; deliberately NOT a multiple of NC*TV
TV = 512              # vocab tile per grid step (use 2048 at V=51200/D=2048)
NC = 2                # vocab shards -> v7x's two TensorCores via "parallel"
V_PAD = ((V + NC * TV - 1) // (NC * TV)) * (NC * TV)
NJ_TOTAL = V_PAD // TV
NJ_CORE = NJ_TOTAL // NC
TEMP = 0.8
MAX_NEW_TOKENS = 20
HARD_STOP = 15
NUM_STEPS = min(MAX_NEW_TOKENS, HARD_STOP + 1)   # reference loop emits exactly 16


def _decode_kernel(x_ref, e_ref, s_ref, g_ref, score_out, idx_out,
                   best_score, best_idx):
    """One vocab tile on one core: int8 tile -> bf16 matmul -> scaled f32 logits
    -> running Gumbel-max over this core's vocab shard."""
    c = pl.program_id(0)
    j = pl.program_id(1)
    nj = pl.num_programs(1)

    @pl.when(j == 0)
    def _():
        best_score[...] = jnp.full_like(best_score, -jnp.inf)
        best_idx[...] = jnp.zeros_like(best_idx)

    # (B_PAD, TV) = x (B_PAD, D) @ E_tile.T ; int8 tile cast to bf16 on the VPU
    # (free under DMA slack), f32 accumulation on the MXU.
    e_bf = e_ref[...].astype(jnp.bfloat16)
    raw = lax.dot_general(
        x_ref[...], e_bf,
        dimension_numbers=(((1,), (1,)), ((), ())),
        preferred_element_type=jnp.float32)

    # Per-vocab-row dequant scale; temperature is folded into the streamed
    # noise (argmax(l/T + g) == argmax(l + T*g)), so no 1/TEMP multiply here.
    score = raw * s_ref[...] + g_ref[...]

    # Global vocab ids for this tile; mask padded columns (ids >= V) to -inf.
    base = (c * nj + j) * TV
    ids = lax.broadcasted_iota(jnp.int32, (B_PAD, TV), 1) + base
    score = jnp.where(ids < V, score, -jnp.inf)

    tile_max = jnp.max(score, axis=-1, keepdims=True)                  # (B_PAD, 1)
    tile_arg = jnp.min(jnp.where(score == tile_max, ids, jnp.int32(2 ** 30)),
                       axis=-1, keepdims=True)                         # (B_PAD, 1)
    better = tile_max > best_score[...]
    best_idx[...] = jnp.where(better, tile_arg, best_idx[...])
    best_score[...] = jnp.where(better, tile_max, best_score[...])

    @pl.when(j == nj - 1)
    def _():
        score_out[...] = best_score[...].reshape(1, B_PAD, 1)
        idx_out[...] = best_idx[...].reshape(1, B_PAD, 1)


def _vmem_limit_bytes():
    """Actual double-buffered footprint + Mosaic slack (NOT the whole chip)."""
    per_buf = (TV * D * 1          # int8 E tile
               + B_PAD * TV * 4    # f32 temperature-scaled Gumbel tile
               + TV * 4            # f32 per-row dequant scales
               + B_PAD * D * 2)    # bf16 gathered activations
    outs = 2 * NC * B_PAD * (4 + 4)
    return int(2 * per_buf + outs + 8 * 1024 * 1024)


def make_decode_step():
    grid_spec = pltpu.PrefetchScalarGridSpec(
        num_scalar_prefetch=0,
        grid=(NC, NJ_CORE),
        in_specs=[
            pl.BlockSpec((B_PAD, D), lambda c, j: (0, 0)),          # bf16 activations
            pl.BlockSpec((TV, D), lambda c, j: (c * NJ_CORE + j, 0)),  # int8 E tile
            pl.BlockSpec((1, TV), lambda c, j: (0, c * NJ_CORE + j)),  # f32 row scales
            pl.BlockSpec((B_PAD, TV), lambda c, j: (0, c * NJ_CORE + j)),  # T*Gumbel
        ],
        out_specs=(
            pl.BlockSpec((1, B_PAD, 1), lambda c, j: (c, 0, 0)),    # per-core best score
            pl.BlockSpec((1, B_PAD, 1), lambda c, j: (c, 0, 0)),    # per-core best id
        ),
        scratch_shapes=[
            pltpu.VMEM((B_PAD, 1), jnp.float32),   # running best gumbel score
            pltpu.VMEM((B_PAD, 1), jnp.int32),     # running argmax (token id)
        ],
    )
    return pl.pallas_call(
        _decode_kernel,
        grid_spec=grid_spec,
        out_shape=(jax.ShapeDtypeStruct((NC, B_PAD, 1), jnp.float32),
                   jax.ShapeDtypeStruct((NC, B_PAD, 1), jnp.int32)),
        compiler_params=pltpu.CompilerParams(
            dimension_semantics=("parallel", "arbitrary"),
            vmem_limit_bytes=_vmem_limit_bytes(),
        ),
    )


_DECODE_STEP = make_decode_step()


def _combine_shards(score, idx):
    """argmax over the NC per-core partials -> (B_PAD,) token ids."""
    best_core = jnp.argmax(score[:, :, 0], axis=0)                      # (B_PAD,)
    return jnp.take_along_axis(idx[:, :, 0], best_core[None, :], axis=0)[0]


@jax.jit
def generate(input_ids, e_q, scales, key):
    """Mirror of TextOnlyMoondream.forward: one fused scan over 16 new tokens."""

    def body(last, key_t):
        # Tied-embedding lookup from the same quantized table the head streams.
        x = (e_q[last].astype(jnp.float32)
             * scales[0, last][:, None]).astype(jnp.bfloat16)          # (B, D)
        x_pad = jnp.zeros((B_PAD, D), jnp.bfloat16).at[:B].set(x)
        # Temperature folded into the noise: argmax(l/T + g) == argmax(l + T*g).
        g = TEMP * jax.random.gumbel(key_t, (B_PAD, V_PAD), dtype=jnp.float32)
        score, idx = _DECODE_STEP(x_pad, e_q, scales, g)
        tok = _combine_shards(score, idx)[:B]                           # (B,)
        return tok, tok

    keys = jax.random.split(key, NUM_STEPS)
    _, toks = lax.scan(body, input_ids[:, -1], keys)                    # (T, B)
    return jnp.concatenate([input_ids, toks.T.astype(input_ids.dtype)], axis=1)


def quantize_rows(e_f32):
    """Per-row symmetric int8 quantization of the embedding table, zero-padded
    to V_PAD rows so every grid tile has a real HBM block (padding is masked
    in-kernel)."""
    s = jnp.maximum(jnp.max(jnp.abs(e_f32), axis=1, keepdims=True) / 127.0, 1e-8)
    q = jnp.clip(jnp.round(e_f32 / s), -127, 127).astype(jnp.int8)
    q_pad = jnp.zeros((V_PAD, D), jnp.int8).at[:V].set(q)
    s_pad = jnp.zeros((1, V_PAD), jnp.float32).at[0, :V].set(s[:, 0])
    return q_pad, s_pad


if __name__ == "__main__":
    key = jax.random.PRNGKey(0)
    k_emb, k_ids, k_gen, k_chk = jax.random.split(key, 4)

    # Deterministic synthetic parameters (text.embeddings.weight, tied lm head).
    emb_f32 = jax.random.normal(k_emb, (V, D), dtype=jnp.float32) * 0.1
    e_q, scales = quantize_rows(emb_f32)
    input_ids = jax.random.randint(k_ids, (B, S), 0, V, dtype=jnp.int32)

    # Single-step sanity check: the kernel's sampled token must attain the row
    # maximum of the plain-JAX score (same quantized weights, same noise), and
    # must never land in the padded vocab range (masking works).
    last = input_ids[:, -1]
    x0 = (e_q[last].astype(jnp.float32)
          * scales[0, last][:, None]).astype(jnp.bfloat16)
    x0_pad = jnp.zeros((B_PAD, D), jnp.bfloat16).at[:B].set(x0)
    g0 = TEMP * jax.random.gumbel(k_chk, (B_PAD, V_PAD), dtype=jnp.float32)
    score0, idx0 = jax.block_until_ready(_DECODE_STEP(x0_pad, e_q, scales, g0))
    tok0 = _combine_shards(score0, idx0)

    ref_raw = jnp.dot(x0_pad, e_q.astype(jnp.bfloat16).T,
                      preferred_element_type=jnp.float32)
    ref_score = (ref_raw * scales + g0)[:, :V]
    picked = jnp.take_along_axis(ref_score[:B], tok0[:B, None], axis=-1)[:, 0]
    assert bool(jnp.all(picked >= ref_score[:B].max(axis=-1) - 1e-3)), "sample mismatch"
    assert bool(jnp.all((tok0[:B] >= 0) & (tok0[:B] < V))), "sampled token out of range"

    # Full generation (exactly 16 new tokens, matching the module's hard stop).
    generated = jax.block_until_ready(generate(input_ids, e_q, scales, k_gen))
    assert generated.shape == (B, S + NUM_STEPS), generated.shape
    assert generated.dtype == jnp.int32
    assert bool(jnp.all((generated >= 0) & (generated < V)))

    print("KERNEL_OK")
</pallas_src>

<mosaic_0001>
module attributes {stable_mosaic.version = 11 : i64} {
  func.func @_decode_kernel(%arg0: i32, %arg1: i32, %arg2: memref<8x128xbf16, #tpu.memory_space<vmem>>, %arg3: memref<512x128xi8, #tpu.memory_space<vmem>>, %arg4: memref<1x512xf32, #tpu.memory_space<vmem>>, %arg5: memref<8x512xf32, #tpu.memory_space<vmem>>, %arg6: memref<1x8x1xf32, #tpu.memory_space<vmem>>, %arg7: memref<1x8x1xi32, #tpu.memory_space<vmem>>, %arg8: memref<8x1xf32, #tpu.memory_space<vmem>>, %arg9: memref<8x1xi32, #tpu.memory_space<vmem>>) attributes {dimension_semantics = [#tpu.dimension_semantics<parallel>, #tpu.dimension_semantics<arbitrary>], iteration_bounds = array<i64: 2, 2>, scalar_prefetch = 0 : i64, scratch_operands = 2 : i64, tpu.core_type = #tpu.core_type<tc>, window_params = [{pipeline_mode = #tpu.pipeline_mode<synchronous>, transform_indices = @transform_0, window_bounds = array<i64: 8, 128>}, {transform_indices = @transform_1, window_bounds = array<i64: 512, 128>}, {transform_indices = @transform_2, window_bounds = array<i64: 1, 512>}, {transform_indices = @transform_3, window_bounds = array<i64: 8, 512>}, {transform_indices = @transform_4, window_bounds = array<i64: 1, 8, 1>}, {transform_indices = @transform_5, window_bounds = array<i64: 1, 8, 1>}]} {
    %c0_i32 = arith.constant 0 : i32
    %0 = arith.cmpi eq, %arg1, %c0_i32 : i32
    %1 = arith.extui %0 : i1 to i32
    %c0_i32_0 = arith.constant 0 : i32
    %2 = arith.cmpi ne, %1, %c0_i32_0 : i32
    scf.if %2 {
      %cst_22 = arith.constant 0xFF800000 : f32
      %41 = vector.broadcast %cst_22 : f32 to vector<8x1xf32>
      %c0_23 = arith.constant 0 : index
      %c0_24 = arith.constant 0 : index
      %42 = vector.load %arg8[%c0_23, %c0_24] : memref<8x1xf32, #tpu.memory_space<vmem>>, vector<8x1xf32>
      tpu.vector_store %arg8[%c0_23, %c0_24], %41 {strides = array<i32>} : memref<8x1xf32, #tpu.memory_space<vmem>>, vector<8x1xf32>,
      %c0_i32_25 = arith.constant 0 : i32
      %43 = vector.broadcast %c0_i32_25 : i32 to vector<8x1xi32>
      %c0_26 = arith.constant 0 : index
      %c0_27 = arith.constant 0 : index
      %44 = vector.load %arg9[%c0_26, %c0_27] : memref<8x1xi32, #tpu.memory_space<vmem>>, vector<8x1xi32>
      tpu.vector_store %arg9[%c0_26, %c0_27], %43 {strides = array<i32>} : memref<8x1xi32, #tpu.memory_space<vmem>>, vector<8x1xi32>,
    } else {
    }
    %c0 = arith.constant 0 : index
    %c0_1 = arith.constant 0 : index
    %3 = vector.load %arg3[%c0, %c0_1] : memref<512x128xi8, #tpu.memory_space<vmem>>, vector<512x128xi8>
    %4 = arith.sitofp %3 : vector<512x128xi8> to vector<512x128xbf16>
    %c0_2 = arith.constant 0 : index
    %c0_3 = arith.constant 0 : index
    %5 = vector.load %arg2[%c0_2, %c0_3] : memref<8x128xbf16, #tpu.memory_space<vmem>>, vector<8x128xbf16>
    %cst = arith.constant dense<0.000000e+00> : vector<8x512xf32>
    %6 = tpu.matmul %5, %4, %cst {dimension_numbers = #tpu.dot_dimension_numbers<[1], [1], [0], [0], [0, 0, 1, 0], [], []>} : vector<8x128xbf16>, vector<512x128xbf16>, vector<8x512xf32> -> vector<8x512xf32>
    %c0_4 = arith.constant 0 : index
    %c0_5 = arith.constant 0 : index
    %7 = vector.load %arg4[%c0_4, %c0_5] : memref<1x512xf32, #tpu.memory_space<vmem>>, vector<1x512xf32>
    %8 = vector.broadcast %7 : vector<1x512xf32> to vector<8x512xf32>
    %9 = arith.mulf %6, %8 : vector<8x512xf32>
    %c0_6 = arith.constant 0 : index
    %c0_7 = arith.constant 0 : index
    %10 = vector.load %arg5[%c0_6, %c0_7] : memref<8x512xf32, #tpu.memory_space<vmem>>, vector<8x512xf32>
    %11 = arith.addf %9, %10 : vector<8x512xf32>
    %c2_i32 = arith.constant 2 : i32
    %12 = arith.muli %arg0, %c2_i32 : i32
    %13 = arith.addi %12, %arg1 : i32
    %c512_i32 = arith.constant 512 : i32
    %14 = arith.muli %13, %c512_i32 : i32
    %15 = tpu.iota {dimensions = array<i32: 1>} : vector<8x512xi32>
    %16 = vector.broadcast %14 : i32 to vector<8x512xi32>
    %17 = arith.addi %15, %16 : vector<8x512xi32>
    %c2000_i32 = arith.constant 2000 : i32
    %18 = vector.broadcast %c2000_i32 : i32 to vector<8x512xi32>
    %19 = arith.cmpi slt, %17, %18 : vector<8x512xi32>
    %cst_8 = arith.constant 0xFF800000 : f32
    %20 = vector.broadcast %cst_8 : f32 to vector<8x512xf32>
    %21 = arith.select %19, %11, %20 : vector<8x512xi1>, vector<8x512xf32>
    %cst_9 = arith.constant dense<0xFF800000> : vector<8xf32>
    %22 = vector.multi_reduction <maximumf>, %21, %cst_9 [1] : vector<8x512xf32> to vector<8xf32>
    %23 = vector.shape_cast %22 : vector<8xf32> to vector<8x1xf32>
    %24 = vector.broadcast %23 : vector<8x1xf32> to vector<8x512xf32>
    %25 = arith.cmpf oeq, %21, %24 : vector<8x512xf32>
    %c1073741824_i32 = arith.constant 1073741824 : i32
    %26 = vector.broadcast %c1073741824_i32 : i32 to vector<8x512xi32>
    %27 = arith.select %25, %17, %26 : vector<8x512xi1>, vector<8x512xi32>
    %cst_10 = arith.constant dense<2147483647> : vector<8xi32>
    %28 = vector.multi_reduction <minsi>, %27, %cst_10 [1] : vector<8x512xi32> to vector<8xi32>
    %29 = vector.shape_cast %28 : vector<8xi32> to vector<8x1xi32>
    %c0_11 = arith.constant 0 : index
    %c0_12 = arith.constant 0 : index
    %30 = vector.load %arg8[%c0_11, %c0_12] : memref<8x1xf32, #tpu.memory_space<vmem>>, vector<8x1xf32>
    %31 = arith.cmpf ogt, %23, %30 : vector<8x1xf32>
    %c0_13 = arith.constant 0 : index
    %c0_14 = arith.constant 0 : index
    %32 = vector.load %arg9[%c0_13, %c0_14] : memref<8x1xi32, #tpu.memory_space<vmem>>, vector<8x1xi32>
    %33 = arith.select %31, %29, %32 : vector<8x1xi1>, vector<8x1xi32>
    %c0_15 = arith.constant 0 : index
    %c0_16 = arith.constant 0 : index
    %34 = vector.load %arg9[%c0_15, %c0_16] : memref<8x1xi32, #tpu.memory_space<vmem>>, vector<8x1xi32>
    tpu.vector_store %arg9[%c0_15, %c0_16], %33 {strides = array<i32>} : memref<8x1xi32, #tpu.memory_space<vmem>>, vector<8x1xi32>,
    %c0_17 = arith.constant 0 : index
    %c0_18 = arith.constant 0 : index
    %35 = vector.load %arg8[%c0_17, %c0_18] : memref<8x1xf32, #tpu.memory_space<vmem>>, vector<8x1xf32>
    %36 = arith.select %31, %23, %35 : vector<8x1xi1>, vector<8x1xf32>
    %c0_19 = arith.constant 0 : index
    %c0_20 = arith.constant 0 : index
    %37 = vector.load %arg8[%c0_19, %c0_20] : memref<8x1xf32, #tpu.memory_space<vmem>>, vector<8x1xf32>
    tpu.vector_store %arg8[%c0_19, %c0_20], %36 {strides = array<i32>} : memref<8x1xf32, #tpu.memory_space<vmem>>, vector<8x1xf32>,
    %c1_i32 = arith.constant 1 : i32
    %38 = arith.cmpi eq, %arg1, %c1_i32 : i32
    %39 = arith.extui %38 : i1 to i32
    %c0_i32_21 = arith.constant 0 : i32
    %40 = arith.cmpi ne, %39, %c0_i32_21 : i32
    scf.if %40 {
      %c0_22 = arith.constant 0 : index
      %c0_23 = arith.constant 0 : index
      %41 = vector.load %arg8[%c0_22, %c0_23] : memref<8x1xf32, #tpu.memory_space<vmem>>, vector<8x1xf32>
      %42 = vector.shape_cast %41 : vector<8x1xf32> to vector<1x8x1xf32>
      %c0_24 = arith.constant 0 : index
      %c0_25 = arith.constant 0 : index
      %c0_26 = arith.constant 0 : index
      %43 = vector.load %arg6[%c0_24, %c0_25, %c0_26] : memref<1x8x1xf32, #tpu.memory_space<vmem>>, vector<1x8x1xf32>
      tpu.vector_store %arg6[%c0_24, %c0_25, %c0_26], %42 {strides = array<i32>} : memref<1x8x1xf32, #tpu.memory_space<vmem>>, vector<1x8x1xf32>,
      %c0_27 = arith.constant 0 : index
      %c0_28 = arith.constant 0 : index
      %44 = vector.load %arg9[%c0_27, %c0_28] : memref<8x1xi32, #tpu.memory_space<vmem>>, vector<8x1xi32>
      %45 = vector.shape_cast %44 : vector<8x1xi32> to vector<1x8x1xi32>
      %c0_29 = arith.constant 0 : index
      %c0_30 = arith.constant 0 : index
      %c0_31 = arith.constant 0 : index
      %46 = vector.load %arg7[%c0_29, %c0_30, %c0_31] : memref<1x8x1xi32, #tpu.memory_space<vmem>>, vector<1x8x1xi32>
      tpu.vector_store %arg7[%c0_29, %c0_30, %c0_31], %45 {strides = array<i32>} : memref<1x8x1xi32, #tpu.memory_space<vmem>>, vector<1x8x1xi32>,
    } else {
    }
    return
  }
  func.func @transform_0(%arg0: i32, %arg1: i32) -> (i32, i32) {
    %c0_i32 = arith.constant 0 : i32
    %c0_i32_0 = arith.constant 0 : i32
    %c0_i32_1 = arith.constant 0 : i32
    return %c0_i32, %c0_i32_0 : i32, i32
  }
  func.func @transform_1(%arg0: i32, %arg1: i32) -> (i32, i32) {
    %c2_i32 = arith.constant 2 : i32
    %0 = arith.muli %arg0, %c2_i32 : i32
    %1 = arith.addi %0, %arg1 : i32
    %c0_i32 = arith.constant 0 : i32
    %c0_i32_0 = arith.constant 0 : i32
    return %1, %c0_i32 : i32, i32
  }
  func.func @transform_2(%arg0: i32, %arg1: i32) -> (i32, i32) {
    %c2_i32 = arith.constant 2 : i32
    %0 = arith.muli %arg0, %c2_i32 : i32
    %1 = arith.addi %0, %arg1 : i32
    %c0_i32 = arith.constant 0 : i32
    %c0_i32_0 = arith.constant 0 : i32
    return %c0_i32, %1 : i32, i32
  }
  func.func @transform_3(%arg0: i32, %arg1: i32) -> (i32, i32) {
    %c2_i32 = arith.constant 2 : i32
    %0 = arith.muli %arg0, %c2_i32 : i32
    %1 = arith.addi %0, %arg1 : i32
    %c0_i32 = arith.constant 0 : i32
    %c0_i32_0 = arith.constant 0 : i32
    return %c0_i32, %1 : i32, i32
  }
  func.func @transform_4(%arg0: i32, %arg1: i32) -> (i32, i32, i32) {
    %c0_i32 = arith.constant 0 : i32
    %c0_i32_0 = arith.constant 0 : i32
    %c0_i32_1 = arith.constant 0 : i32
    return %arg0, %c0_i32, %c0_i32_0 : i32, i32, i32
  }
  func.func @transform_5(%arg0: i32, %arg1: i32) -> (i32, i32, i32) {
    %c0_i32 = arith.constant 0 : i32
    %c0_i32_0 = arith.constant 0 : i32
    %c0_i32_1 = arith.constant 0 : i32
    return %arg0, %c0_i32, %c0_i32_0 : i32, i32, i32
  }
}

</mosaic_0001>

<llo_original>
// kernel: tpu_custom_call.1
$region0: #{tpu_custom_call.1}
  #allocation0 [shape = 'u32[]', space=smem, size = 0x4, offset = 0x4, fixed_abs, tag = 'smem constant byte address 0x4 - core index']
  #allocation1 [shape = 'u32[144,128]{1,0:T(1,128)}', space=vmem, size = 0x12000, scoped, tag = 'internal scratch']
  #allocation2 [shape = 'f32[8,1]{1,0:T(8,128)}', space=vmem, size = 0x1000, scoped, tag = 'scratch operand']
  #allocation3 [shape = 's32[8,1]{1,0:T(8,128)}', space=vmem, size = 0x1000, scoped, tag = 'scratch operand']
  %s0 = inlined_call_operand.hbm [shape: bf16[8,128], index: 0, kind: input, shape index: {}]
  %s1 = inlined_call_operand.hbm [shape: s8[2048,128], index: 1, kind: input, shape index: {}]
  %s2 = inlined_call_operand.hbm [shape: f32[1,2048], index: 2, kind: input, shape index: {}]
  %s3 = inlined_call_operand.hbm [shape: f32[8,2048], index: 3, kind: input, shape index: {}]
  %s4 = inlined_call_operand.vmem [shape: f32[2,8,1], index: 4, kind: output, shape index: {0}]
  %s5 = inlined_call_operand.vmem [shape: s32[2,8,1], index: 5, kind: output, shape index: {1}]
  %6 = xla_tuple %s4, %s5
  %s7 = sld [smem:[#allocation0]]
  $region81: #{tpu_custom_call.1} parent=0
    _
  %s9 = ssub.s32 1, %s7
  %s10 = scalar_select 0, %s9, %s7
  $region1: #{tpu_custom_call.1} parent=0
    #allocation4 [shape = 'u8[2048]{0}', space=vmem, size = 0x800, scoped, tag = 'input window, operand 0, single buffered']
    #allocation5 [shape = 's32[2]{0}', space=sflag, size = 0x8, scoped, tag = 'scoped memory for tpu_custom_call.1']
    #allocation6 [shape = 'u8[131072]{0}', space=vmem, size = 0x20000, scoped, tag = 'input window, operand 1']
    #allocation7 [shape = 's32[2]{0}', space=sflag, size = 0x8, scoped, tag = 'scoped memory for tpu_custom_call.1']
    #allocation8 [shape = 'u8[4096]{0}', space=vmem, size = 0x1000, scoped, tag = 'input window, operand 2']
    #allocation9 [shape = 'u8[32768]{0}', space=vmem, size = 0x8000, scoped, tag = 'input window, operand 3']
    #allocation10 [shape = 's32[2]{0}', space=sflag, size = 0x8, scoped, tag = 'scoped memory for tpu_custom_call.1']
    %11 = vsyncpa [#allocation5], 0
    %12 = vsyncpa [#allocation7], 0
    %s13 = scalar_lea.sflag [#allocation7], 1
    %14 = vsyncpa %s13, 0
    %15 = vsyncpa [#allocation10], 0
    %s16 = scalar_lea.sflag [#allocation10], 1
    %17 = vsyncpa %s16, 0
    loop: start=0, step=1, limit=6
    $region2: #{tpu_custom_call.1} parent=1 // loop_pre_header
      _
    $region3: #{tpu_custom_call.1} parent=1 // loop_header
      %s19 = sphi 0, %s23
      %p20 = scmp.ge.s32.totalorder %s19, 6
      %s26 = sphi 0, %s38
      %s27 = sphi 0, %s34
      %s28 = sphi 0, %s26
      %s29 = sphi 0, %s27
      %s30 = sphi 0, %s28
      %s31 = sphi 0, %s29
      %s39 = sphi 0, %s39
      %s41 = sphi 0, %s39
      %s42 = sphi 0, %s41
      %s56 = sphi 0, %s42
      %s66 = sphi 0, %s68
      %s69 = sphi 0, %s66
      %s70 = sphi 0, %s69
      %s86 = sphi 0, %s70
      %s96 = sphi 0, %s98
      %s99 = sphi 0, %s96
      %s100 = sphi 0, %s99
      %s116 = sphi 0, %s100
      %s126 = sphi 0, %s128
      %s129 = sphi 0, %s126
      %s130 = sphi 0, %s129
      %s146 = sphi 0, %s130
      %s152 = sphi 0, %s154
      %s155 = sphi 0, %s152
      %s156 = sphi 0, %s155
      %s172 = sphi 0, %s156
      %s178 = sphi 0, %s180
      %s181 = sphi 0, %s178
      %s182 = sphi 0, %s181
      %s198 = sphi 0, %s182
    $region4: #{tpu_custom_call.1} parent=1 // loop_header_branch
      %22 = sbr.rel (%p20) target = $region8
    $region5: #{tpu_custom_call.1} parent=1 // loop_body
      %s24 = ssub.s32 %s19, 1
      %s25 = ssub.s32 %s19, 2
      %s32 = sadd.s32 1, %s27
      %p33 = scmp.ge.s32.totalorder %s32, 2
      %s34 = scalar_select %p33, 0, %s32
      %s35 = sadd.s32 1, %s26
      %s36 = scalar_select %p33, %s35, %s26
      %p37 = scmp.ge.s32.totalorder %s36, 2
      %s38 = scalar_select %p37, 0, %s36
      %s40 = sadd.s32 %s39, 1
      %p43 = scmp.eq.s32.totalorder %s19, 3
      %p44 = scmp.ne.s32.totalorder %s39, %s41
      %p45 = scmp.eq.s32.totalorder %s19, 0
      %p46 = por %p44, %p45
      %p47 = scmp.ne.s32.totalorder %s39, %s41
      %p48 = scmp.eq.s32.totalorder %s24, 3
      %p49 = por %p47, %p48
      %p50 = scmp.ne.s32.totalorder %s41, %s42
      %p51 = scmp.eq.s32.totalorder %s24, 0
      %p52 = por %p50, %p51
      %p53 = scmp.ne.s32.totalorder %s41, %s42
      %p54 = scmp.eq.s32.totalorder %s25, 3
      %p55 = por %p53, %p54
      %p57 = scmp.ne.s32.totalorder %s42, %s56
      %p58 = scmp.eq.s32.totalorder %s25, 0
      %p59 = por %p57, %p58
      %s60 = smul.u32 %s26, 2
      %s61 = sadd.s32 %s60, %s27
      %s62 = smul.u32 %s38, 2
      %s63 = sadd.s32 %s62, %s34
      %s64 = ssub.s32 %s61, %s63
      %p65 = scmp.eq.s32.totalorder %s64, 0
      %s67 = sadd.s32 %s66, 1
      %s68 = scalar_select %p65, %s66, %s67
      %p71 = pneg %p65
      %p72 = scmp.eq.s32.totalorder %s19, 3
      %p73 = por %p71, %p72
      %p74 = scmp.ne.s32.totalorder %s66, %s69
      %p75 = scmp.eq.s32.totalorder %s19, 0
      %p76 = por %p74, %p75
      %p77 = scmp.ne.s32.totalorder %s66, %s69
      %p78 = scmp.eq.s32.totalorder %s24, 3
      %p79 = por %p77, %p78
      %p80 = scmp.ne.s32.totalorder %s69, %s70
      %p81 = scmp.eq.s32.totalorder %s24, 0
      %p82 = por %p80, %p81
      %p83 = scmp.ne.s32.totalorder %s69, %s70
      %p84 = scmp.eq.s32.totalorder %s25, 3
      %p85 = por %p83, %p84
      %p87 = scmp.ne.s32.totalorder %s70, %s86
      %p88 = scmp.eq.s32.totalorder %s25, 0
      %p89 = por %p87, %p88
      %s90 = smul.u32 %s26, 2
      %s91 = sadd.s32 %s90, %s27
      %s92 = smul.u32 %s38, 2
      %s93 = sadd.s32 %s92, %s34
      %s94 = ssub.s32 %s91, %s93
      %p95 = scmp.eq.s32.totalorder %s94, 0
      %s97 = sadd.s32 %s96, 1
      %s98 = scalar_select %p95, %s96, %s97
      %p101 = pneg %p95
      %p102 = scmp.eq.s32.totalorder %s19, 3
      %p103 = por %p101, %p102
      %p104 = scmp.ne.s32.totalorder %s96, %s99
      %p105 = scmp.eq.s32.totalorder %s19, 0
      %p106 = por %p104, %p105
      %p107 = scmp.ne.s32.totalorder %s96, %s99
      %p108 = scmp.eq.s32.totalorder %s24, 3
      %p109 = por %p107, %p108
      %p110 = scmp.ne.s32.totalorder %s99, %s100
      %p111 = scmp.eq.s32.totalorder %s24, 0
      %p112 = por %p110, %p111
      %p113 = scmp.ne.s32.totalorder %s99, %s100
      %p114 = scmp.eq.s32.totalorder %s25, 3
      %p115 = por %p113, %p114
      %p117 = scmp.ne.s32.totalorder %s100, %s116
      %p118 = scmp.eq.s32.totalorder %s25, 0
      %p119 = por %p117, %p118
      %s120 = smul.u32 %s26, 2
      %s121 = sadd.s32 %s120, %s27
      %s122 = smul.u32 %s38, 2
      %s123 = sadd.s32 %s122, %s34
      %s124 = ssub.s32 %s121, %s123
      %p125 = scmp.eq.s32.totalorder %s124, 0
      %s127 = sadd.s32 %s126, 1
      %s128 = scalar_select %p125, %s126, %s127
      %p131 = pneg %p125
      %p132 = scmp.eq.s32.totalorder %s19, 3
      %p133 = por %p131, %p132
      %p134 = scmp.ne.s32.totalorder %s126, %s129
      %p135 = scmp.eq.s32.totalorder %s19, 0
      %p136 = por %p134, %p135
      %p137 = scmp.ne.s32.totalorder %s126, %s129
      %p138 = scmp.eq.s32.totalorder %s24, 3
      %p139 = por %p137, %p138
      %p140 = scmp.ne.s32.totalorder %s129, %s130
      %p141 = scmp.eq.s32.totalorder %s24, 0
      %p142 = por %p140, %p141
      %p143 = scmp.ne.s32.totalorder %s129, %s130
      %p144 = scmp.eq.s32.totalorder %s25, 3
      %p145 = por %p143, %p144
      %p147 = scmp.ne.s32.totalorder %s130, %s146
      %p148 = scmp.eq.s32.totalorder %s25, 0
      %p149 = por %p147, %p148
      %s150 = ssub.s32 %s26, %s38
      %p151 = scmp.eq.s32.totalorder %s150, 0
      %s153 = sadd.s32 %s152, 1
      %s154 = scalar_select %p151, %s152, %s153
      %p157 = pneg %p151
      %p158 = scmp.eq.s32.totalorder %s19, 3
      %p159 = por %p157, %p158
      %p160 = scmp.ne.s32.totalorder %s152, %s155
      %p161 = scmp.eq.s32.totalorder %s19, 0
      %p162 = por %p160, %p161
      %p163 = scmp.ne.s32.totalorder %s152, %s155
      %p164 = scmp.eq.s32.totalorder %s24, 3
      %p165 = por %p163, %p164
      %p166 = scmp.ne.s32.totalorder %s155, %s156
      %p167 = scmp.eq.s32.totalorder %s24, 0
      %p168 = por %p166, %p167
      %p169 = scmp.ne.s32.totalorder %s155, %s156
      %p170 = scmp.eq.s32.totalorder %s25, 3
      %p171 = por %p169, %p170
      %p173 = scmp.ne.s32.totalorder %s156, %s172
      %p174 = scmp.eq.s32.totalorder %s25, 0
      %p175 = por %p173, %p174
      %s176 = ssub.s32 %s26, %s38
      %p177 = scmp.eq.s32.totalorder %s176, 0
      %s179 = sadd.s32 %s178, 1
      %s180 = scalar_select %p177, %s178, %s179
      %p183 = pneg %p177
      %p184 = scmp.eq.s32.totalorder %s19, 3
      %p185 = por %p183, %p184
      %p186 = scmp.ne.s32.totalorder %s178, %s181
      %p187 = scmp.eq.s32.totalorder %s19, 0
      %p188 = por %p186, %p187
      %p189 = scmp.ne.s32.totalorder %s178, %s181
      %p190 = scmp.eq.s32.totalorder %s24, 3
      %p191 = por %p189, %p190
      %p192 = scmp.ne.s32.totalorder %s181, %s182
      %p193 = scmp.eq.s32.totalorder %s24, 0
      %p194 = por %p192, %p193
      %p195 = scmp.ne.s32.totalorder %s181, %s182
      %p196 = scmp.eq.s32.totalorder %s25, 3
      %p197 = por %p195, %p196
      %p199 = scmp.ne.s32.totalorder %s182, %s198
      %p200 = scmp.eq.s32.totalorder %s25, 0
      %p201 = por %p199, %p200
      %p202 = scmp.le.s32.totalorder 1, %s19
      %p203 = scmp.lt.s32.totalorder %s19, 5
      %p204 = pnand %p202, %p203
      %p205 = pneg %p204
      // Predicated region
      $region9: #{tpu_custom_call.1} parent=5 // pred_check
        _
      $region10: #{tpu_custom_call.1} parent=5 // pred_check_branch
        %207 = sbr.rel (%p204) target = $region12
      $region11: #{tpu_custom_call.1} parent=5 // pred_region
        %s208 = ssub.s32 %s19, 1
        // Predicated region
        $region13: #{tpu_custom_call.1} parent=11 // pred_check
          %p209 = pneg %p52
        $region14: #{tpu_custom_call.1} parent=11 // pred_check_branch
          %211 = sbr.rel (%p209) target = $region16
        $region15: #{tpu_custom_call.1} parent=11 // pred_region
          %s213 = ssub.s32 64, 64
          %214 = vsyncadd [#allocation5], %s213
          %s216 = sshll.u32 [#allocation4], 4
          %s217 = int_to_ptr.vmem [resolvable:$true] %s216
          %219 = dma.hbm_to_vmem [thread:$0]  %s0, 64, %s217, [#allocation5]
        $region16: #{tpu_custom_call.1} parent=11 // pred_fallthru
          _
      $region12: #{tpu_custom_call.1} parent=5 // pred_fallthru
        _
      %p220 = scmp.lt.s32.totalorder %s19, 4
      // Predicated region
      $region17: #{tpu_custom_call.1} parent=5 // pred_check
        %p221 = pneg %p220
      $region18: #{tpu_custom_call.1} parent=5 // pred_check_branch
        %223 = sbr.rel (%p221) target = $region20
      $region19: #{tpu_custom_call.1} parent=5 // pred_region
        // Predicated region
        $region21: #{tpu_custom_call.1} parent=19 // pred_check
          %p224 = pneg %p76
        $region22: #{tpu_custom_call.1} parent=19 // pred_check_branch
          %226 = sbr.rel (%p224) target = $region24
        $region23: #{tpu_custom_call.1} parent=19 // pred_region
          %s227 = sand.u32 %s19, 1
          %s228 = scalar_lea.sflag [#allocation7], %s227
          %s229 = sand.u32 %s66, 1
          %s230 = smul.addr %s229, 128
          %s231 = scalar_lea.vmem [#allocation6], %s230
          %s232 = smul.u32 %s26, 2
          %s233 = sadd.s32 %s232, %s27
          %s234 = smul.u32 16, %s233
          %s236 = ssub.s32 2048, 2048
          %237 = vsyncadd %s228, %s236
          %s238 = smul.addr %s234, 128
          %s239 = scalar_lea.hbm %s1, %s238
          %s240 = sshll.u32 %s231, 4
          %s241 = int_to_ptr.vmem [resolvable:$true] %s240
          %246 = dma.hbm_to_vmem [thread:$0]  %s239, 2048, %s241, %s228, 128, 128, 8
        $region24: #{tpu_custom_call.1} parent=19 // pred_fallthru
          _
        // Predicated region
        $region25: #{tpu_custom_call.1} parent=19 // pred_check
          %p247 = pneg %p106
        $region26: #{tpu_custom_call.1} parent=19 // pred_check_branch
          %249 = sbr.rel (%p247) target = $region28
        $region27: #{tpu_custom_call.1} parent=19 // pred_region
          %s250 = sand.u32 %s19, 1
          %s251 = scalar_lea.sflag [#allocation7], %s250
          %s252 = sand.u32 %s96, 1
          %s253 = smul.addr %s252, 4
          %s254 = scalar_lea.vmem [#allocation8], %s253
          %s255 = smul.u32 %s26, 2
          %s256 = sadd.s32 %s255, %s27
          %s257 = smul.u32 4, %s256
          %s259 = ssub.s32 64, 64
          %260 = vsyncadd %s251, %s259
          %s261 = smul.addr %s257, 16
          %s262 = scalar_lea.hbm %s2, %s261
          %s264 = sshll.u32 %s254, 4
          %s265 = int_to_ptr.vmem [resolvable:$true] %s264
          %267 = dma.hbm_to_vmem [thread:$0]  %s262, 64, %s265, %s251
        $region28: #{tpu_custom_call.1} parent=19 // pred_fallthru
          _
        // Predicated region
        $region29: #{tpu_custom_call.1} parent=19 // pred_check
          %p268 = pneg %p136
        $region30: #{tpu_custom_call.1} parent=19 // pred_check_branch
          %270 = sbr.rel (%p268) target = $region32
        $region31: #{tpu_custom_call.1} parent=19 // pred_region
          %s271 = sand.u32 %s126, 1
          %s272 = scalar_lea.sflag [#allocation10], %s271
          %s273 = sand.u32 %s126, 1
          %s274 = smul.addr %s273, 32
          %s275 = scalar_lea.vmem [#allocation9], %s274
          %s276 = smul.u32 %s26, 2
          %s277 = sadd.s32 %s276, %s27
          %s278 = smul.u32 4, %s277
          %s280 = ssub.s32 512, 512
          %281 = vsyncadd %s272, %s280
          %s282 = smul.addr %s278, 128
          %s283 = scalar_lea.hbm %s3, %s282
          %s285 = sshll.u32 %s275, 4
          %s286 = int_to_ptr.vmem [resolvable:$true] %s285
          %288 = dma.hbm_to_vmem [thread:$0]  %s283, 512, %s286, %s272
        $region32: #{tpu_custom_call.1} parent=19 // pred_fallthru
          _
      $region20: #{tpu_custom_call.1} parent=5 // pred_fallthru
        _
      %p289 = scmp.le.s32.totalorder 1, %s19
      %p290 = scmp.lt.s32.totalorder %s19, 5
      %p291 = pnand %p289, %p290
      %p292 = pneg %p291
      // Predicated region
      $region33: #{tpu_custom_call.1} parent=5 // pred_check
        _
      $region34: #{tpu_custom_call.1} parent=5 // pred_check_branch
        %294 = sbr.rel (%p291) target = $region36
      $region35: #{tpu_custom_call.1} parent=5 // pred_region
        %s295 = ssub.s32 %s19, 1
        // Predicated region
        $region37: #{tpu_custom_call.1} parent=35 // pred_check
          %p296 = pneg %p52
        $region38: #{tpu_custom_call.1} parent=35 // pred_check_branch
          %298 = sbr.rel (%p296) target = $region40
        $region39: #{tpu_custom_call.1} parent=35 // pred_region
          %299 = dma.done [#allocation5], 64
        $region40: #{tpu_custom_call.1} parent=35 // pred_fallthru
          _
        %s300 = sand.u32 %s24, 1
        %s301 = scalar_lea.sflag [#allocation7], %s300
        %s302 = sand.u32 %s69, 1
        %s303 = smul.addr %s302, 128
        %s304 = scalar_lea.vmem [#allocation6], %s303
        // Predicated region
        $region41: #{tpu_custom_call.1} parent=35 // pred_check
          %p305 = pneg %p82
        $region42: #{tpu_custom_call.1} parent=35 // pred_check_branch
          %307 = sbr.rel (%p305) target = $region44
        $region43: #{tpu_custom_call.1} parent=35 // pred_region
          %308 = dma.done %s301, 2048
        $region44: #{tpu_custom_call.1} parent=35 // pred_fallthru
          _
        %s309 = sand.u32 %s24, 1
        %s310 = scalar_lea.sflag [#allocation7], %s309
        %s311 = sand.u32 %s99, 1
        %s312 = smul.addr %s311, 4
        %s313 = scalar_lea.vmem [#allocation8], %s312
        // Predicated region
        $region45: #{tpu_custom_call.1} parent=35 // pred_check
          %p314 = pneg %p112
        $region46: #{tpu_custom_call.1} parent=35 // pred_check_branch
          %316 = sbr.rel (%p314) target = $region48
        $region47: #{tpu_custom_call.1} parent=35 // pred_region
          %317 = dma.done %s310, 64
        $region48: #{tpu_custom_call.1} parent=35 // pred_fallthru
          _
        %s318 = sand.u32 %s129, 1
        %s319 = scalar_lea.sflag [#allocation10], %s318
        %s320 = sand.u32 %s129, 1
        %s321 = smul.addr %s320, 32
        %s322 = scalar_lea.vmem [#allocation9], %s321
        // Predicated region
        $region49: #{tpu_custom_call.1} parent=35 // pred_check
          %p323 = pneg %p142
        $region50: #{tpu_custom_call.1} parent=35 // pred_check_branch
          %325 = sbr.rel (%p323) target = $region52
        $region51: #{tpu_custom_call.1} parent=35 // pred_region
          %326 = dma.done %s319, 512
        $region52: #{tpu_custom_call.1} parent=35 // pred_fallthru
          _
        %p327 = pneg %p52
        %p328 = pneg %p49
        %s329 = sand.u32 %s24, 1
        %s330 = scalar_lea.sflag [#allocation7], %s329
        %s331 = sand.u32 %s69, 1
        %s332 = smul.addr %s331, 128
        %s333 = scalar_lea.vmem [#allocation6], %s332
        %p334 = pneg %p82
        %p335 = pneg %p79
        %s336 = sand.u32 %s24, 1
        %s337 = scalar_lea.sflag [#allocation7], %s336
        %s338 = sand.u32 %s99, 1
        %s339 = smul.addr %s338, 4
        %s340 = scalar_lea.vmem [#allocation8], %s339
        %p341 = pneg %p112
        %p342 = pneg %p109
        %s343 = sand.u32 %s129, 1
        %s344 = scalar_lea.sflag [#allocation10], %s343
        %s345 = sand.u32 %s129, 1
        %s346 = smul.addr %s345, 32
        %s347 = scalar_lea.vmem [#allocation9], %s346
        %p348 = pneg %p142
        %p349 = pneg %p139
        %p350 = pneg %p168
        %p351 = pneg %p165
        %p352 = scmp.lt.s32.totalorder %s28, 1
        %s353 = scalar_select %p352, %s28, 1
        %s354 = smul.addr %s353, 8
        %s355 = scalar_lea.vmem %s4, %s354
        %p356 = pneg %p194
        %p357 = pneg %p191
        %p358 = scmp.lt.s32.totalorder %s28, 1
        %s359 = scalar_select %p358, %s28, 1
        %s360 = smul.addr %s359, 8
        %s361 = scalar_lea.vmem %s5, %s360
        %s362 = smul.u32 %s28, 2
        %s363 = sadd.s32 %s362, %s29
        %s364 = smul.u32 16, %s363
        %s365 = smul.u32 %s28, 2
        %s366 = sadd.s32 %s365, %s29
        %s367 = smul.u32 4, %s366
        %s368 = smul.u32 %s28, 2
        %s369 = sadd.s32 %s368, %s29
        %s370 = smul.u32 4, %s369
        %p371 = scmp.lt.s32.totalorder %s28, 1
        %s372 = scalar_select %p371, %s28, 1
        %s373 = smul.addr %s372, 8
        %s374 = scalar_lea.vmem %s4, %s373
        %p375 = scmp.lt.s32.totalorder %s28, 1
        %s376 = scalar_select %p375, %s28, 1
        %s377 = smul.addr %s376, 8
        %s378 = scalar_lea.vmem %s5, %s377
        %p380 = scmp.eq.s32.totalorder %s29, 0
        // Predicated region
        $region53: #{tpu_custom_call.1} parent=35 // pred_check
          %p381 = pneg %p380
        $region54: #{tpu_custom_call.1} parent=35 // pred_check_branch
          %383 = sbr.rel (%p381) target = $region56
        $region55: #{tpu_custom_call.1} parent=35 // pred_region
          %vm384 = vcmask 7168
          %385 = vst.msk [vmem:[#allocation2] sm:$0xff] %vm384, -inf
          %386 = vst.msk [vmem:[#allocation3] sm:$0xff] %vm384, 0
        $region56: #{tpu_custom_call.1} parent=35 // pred_fallthru
          _
        %v387 = vld [vmem:[%s304] sm:$0xff]
        %v388 = vld [vmem:[%s304 + $0x8] sm:$0xff]
        %v389 = vld [vmem:[%s304 + $0x10] sm:$0xff]
        %v390 = vld [vmem:[%s304 + $0x18] sm:$0xff]
        %v391 = vld [vmem:[%s304 + $0x20] sm:$0xff]
        %v392 = vld [vmem:[%s304 + $0x28] sm:$0xff]
        %v393 = vld [vmem:[%s304 + $0x30] sm:$0xff]
        %v394 = vld [vmem:[%s304 + $0x38] sm:$0xff]
        %v395 = vld [vmem:[%s304 + $0x40] sm:$0xff]
        %v396 = vld [vmem:[%s304 + $0x48] sm:$0xff]
        %v397 = vld [vmem:[%s304 + $0x50] sm:$0xff]
        %v398 = vld [vmem:[%s304 + $0x58] sm:$0xff]
        %v399 = vld [vmem:[%s304 + $0x60] sm:$0xff]
        %v400 = vld [vmem:[%s304 + $0x68] sm:$0xff]
        %v401 = vld [vmem:[%s304 + $0x70] sm:$0xff]
        %v402 = vld [vmem:[%s304 + $0x78] sm:$0xff]
        %v403 = vunpack.c.l.s8.bf16 %v387
        %v404 = vunpack.c.h.s8.bf16 %v387
        %v405 = vunpack.c.l.s8.bf16 %v388
        %v406 = vunpack.c.h.s8.bf16 %v388
        %v407 = vunpack.c.l.s8.bf16 %v389
        %v408 = vunpack.c.h.s8.bf16 %v389
        %v409 = vunpack.c.l.s8.bf16 %v390
        %v410 = vunpack.c.h.s8.bf16 %v390
        %v411 = vunpack.c.l.s8.bf16 %v391
        %v412 = vunpack.c.h.s8.bf16 %v391
        %v413 = vunpack.c.l.s8.bf16 %v392
        %v414 = vunpack.c.h.s8.bf16 %v392
        %v415 = vunpack.c.l.s8.bf16 %v393
        %v416 = vunpack.c.h.s8.bf16 %v393
        %v417 = vunpack.c.l.s8.bf16 %v394
        %v418 = vunpack.c.h.s8.bf16 %v394
        %v419 = vunpack.c.l.s8.bf16 %v395
        %v420 = vunpack.c.h.s8.bf16 %v395
        %v421 = vunpack.c.l.s8.bf16 %v396
        %v422 = vunpack.c.h.s8.bf16 %v396
        %v423 = vunpack.c.l.s8.bf16 %v397
        %v424 = vunpack.c.h.s8.bf16 %v397
        %v425 = vunpack.c.l.s8.bf16 %v398
        %v426 = vunpack.c.h.s8.bf16 %v398
        %v427 = vunpack.c.l.s8.bf16 %v399
        %v428 = vunpack.c.h.s8.bf16 %v399
        %v429 = vunpack.c.l.s8.bf16 %v400
        %v430 = vunpack.c.h.s8.bf16 %v400
        %v431 = vunpack.c.l.s8.bf16 %v401
        %v432 = vunpack.c.h.s8.bf16 %v401
        %v433 = vunpack.c.l.s8.bf16 %v402
        %v434 = vunpack.c.h.s8.bf16 %v402
        %v435 = vld [vmem:[#allocation4] sm:$0xf]
        %436 = vmatprep.subr.bf16.mxu0 0
        %437 = vmatpush1.bf16.xpose.msra.mxu0 %v410
        %438 = vmatprep.subr.bf16.mxu0 0
        %439 = vmatpush1.bf16.xpose.msra.mxu0 %v409
        %440 = vmatprep.subr.bf16.mxu0 0
        %441 = vmatpush1.bf16.xpose.msra.mxu0 %v408
        %442 = vmatprep.subr.bf16.mxu0 0
        %443 = vmatpush1.bf16.xpose.msra.mxu0 %v407
        %444 = vmatprep.subr.bf16.mxu0 0
        %445 = vmatpush1.bf16.xpose.msra.mxu0 %v406
        %446 = vmatprep.subr.bf16.mxu0 0
        %447 = vmatpush1.bf16.xpose.msra.mxu0 %v405
        %448 = vmatprep.subr.bf16.mxu0 0
        %449 = vmatpush1.bf16.xpose.msra.mxu0 %v404
        %450 = vmatprep.subr.bf16.mxu0 0
        %451 = vmatpush1.bf16.xpose.msra.mxu0 %v403
        %452 = vmatprep.subr.bf16.mxu0 0
        %453 = vmatpush2.bf16.xpose.msra.mxu0 %v418
        %454 = vmatprep.subr.bf16.mxu0 0
        %455 = vmatpush2.bf16.xpose.msra.mxu0 %v417
        %456 = vmatprep.subr.bf16.mxu0 0
        %457 = vmatpush2.bf16.xpose.msra.mxu0 %v416
        %458 = vmatprep.subr.bf16.mxu0 0
        %459 = vmatpush2.bf16.xpose.msra.mxu0 %v415
        %460 = vmatprep.subr.bf16.mxu0 0
        %461 = vmatpush2.bf16.xpose.msra.mxu0 %v414
        %462 = vmatprep.subr.bf16.mxu0 0
        %463 = vmatpush2.bf16.xpose.msra.mxu0 %v413
        %464 = vmatprep.subr.bf16.mxu0 0
        %465 = vmatpush2.bf16.xpose.msra.mxu0 %v412
        %466 = vmatprep.subr.bf16.mxu0 0
        %467 = vmatpush2.bf16.xpose.msra.mxu0 %v411
        %468 = vmatprep.mubr.bf16.mxu0 0
        %469 = vmatmul.mubr.bf16.gmra.mxu0 %v435
        %v470 = vpop.f32.mrf.mxu0
        %v471 = vadd.f32 0.0, %v470
        %v472 = vpop.f32.mrf.mxu0
        %v473 = vadd.f32 0.0, %v472
        %v474 = vpop.f32.mrf.mxu0
        %v475 = vpop.f32.mrf.mxu0
        %476 = vdwg.mxu0
        %477 = vmatprep.subr.bf16.mxu0 0
        %478 = vmatpush1.bf16.xpose.msra.mxu0 %v426
        %479 = vmatprep.subr.bf16.mxu0 0
        %480 = vmatpush1.bf16.xpose.msra.mxu0 %v425
        %481 = vmatprep.subr.bf16.mxu0 0
        %482 = vmatpush1.bf16.xpose.msra.mxu0 %v424
        %483 = vmatprep.subr.bf16.mxu0 0
        %484 = vmatpush1.bf16.xpose.msra.mxu0 %v423
        %485 = vmatprep.subr.bf16.mxu0 0
        %486 = vmatpush1.bf16.xpose.msra.mxu0 %v422
        %487 = vmatprep.subr.bf16.mxu0 0
        %488 = vmatpush1.bf16.xpose.msra.mxu0 %v421
        %489 = vmatprep.subr.bf16.mxu0 0
        %490 = vmatpush1.bf16.xpose.msra.mxu0 %v420
        %491 = vmatprep.subr.bf16.mxu0 0
        %492 = vmatpush1.bf16.xpose.msra.mxu0 %v419
        %493 = vmatprep.subr.bf16.mxu0 0
        %494 = vmatpush2.bf16.xpose.msra.mxu0 %v434
        %495 = vmatprep.subr.bf16.mxu0 0
        %496 = vmatpush2.bf16.xpose.msra.mxu0 %v433
        %497 = vmatprep.subr.bf16.mxu0 0
        %498 = vmatpush2.bf16.xpose.msra.mxu0 %v432
        %499 = vmatprep.subr.bf16.mxu0 0
        %500 = vmatpush2.bf16.xpose.msra.mxu0 %v431
        %501 = vmatprep.subr.bf16.mxu0 0
        %502 = vmatpush2.bf16.xpose.msra.mxu0 %v430
        %503 = vmatprep.subr.bf16.mxu0 0
        %504 = vmatpush2.bf16.xpose.msra.mxu0 %v429
        %505 = vmatprep.subr.bf16.mxu0 0
        %506 = vmatpush2.bf16.xpose.msra.mxu0 %v428
        %507 = vmatprep.subr.bf16.mxu0 0
        %508 = vmatpush2.bf16.xpose.msra.mxu0 %v427
        %509 = vmatprep.mubr.bf16.mxu0 0
        %510 = vmatmul.mubr.bf16.gmra.mxu0 %v435
        %v511 = vpop.f32.mrf.mxu0
        %v512 = vadd.f32 0.0, %v511
        %v513 = vpop.f32.mrf.mxu0
        %v514 = vadd.f32 0.0, %v513
        %v515 = vpop.f32.mrf.mxu0
        %v516 = vpop.f32.mrf.mxu0
        %517 = vdwg.mxu0
        %v518 = vld [vmem:[%s313] sm:$0xf]
        %v520 = vlaneseq
        %v521 = vshrl.u32 %v520, 7
        %v522 = vsub.s32 0, %v521
        %v523 = vrot.slane %v518, %v522
        %v524 = vlaneseq
        %v525 = vshrl.u32 %v524, 7
        %v526 = vsub.s32 1, %v525
        %v527 = vrot.slane %v518, %v526
        %v528 = vlaneseq
        %v529 = vshrl.u32 %v528, 7
        %v530 = vsub.s32 2, %v529
        %v531 = vrot.slane %v518, %v530
        %v532 = vlaneseq
        %v533 = vshrl.u32 %v532, 7
        %v534 = vsub.s32 3, %v533
        %v535 = vrot.slane %v518, %v534
        %v540 = vmul.f32 %v471, %v523
        %v541 = vmul.f32 %v473, %v527
        %v542 = vmul.f32 %v512, %v531
        %v543 = vmul.f32 %v514, %v535
        %v544 = vld [vmem:[%s322] sm:$0xff]
        %v545 = vld [vmem:[%s322 + $0x8] sm:$0xff]
        %v546 = vld [vmem:[%s322 + $0x10] sm:$0xff]
        %v547 = vld [vmem:[%s322 + $0x18] sm:$0xff]
        %v548 = vadd.f32 %v540, %v544
        %v549 = vadd.f32 %v541, %v545
        %v550 = vadd.f32 %v542, %v546
        %v551 = vadd.f32 %v543, %v547
        %s552 = smul.u32 %s28, 2
        %s553 = sadd.s32 %s552, %s29
        %s554 = smul.u32 %s553, 512
        %v555 = vlaneseq
        %v556 = vand.u32 %v555, 127
        %v557 = vadd.s32 %v556, 128
        %v558 = vadd.s32 %v556, 256
        %v559 = vadd.s32 %v556, 384
        %v560 = vstv %s554
        %v561 = vadd.s32 %v556, %v560
        %v562 = vadd.s32 %v557, %v560
        %v563 = vadd.s32 %v558, %v560
        %v564 = vadd.s32 %v559, %v560
        %vm565 = vcmp.lt.s32.totalorder %v561, 2000
        %vm566 = vcmp.lt.s32.totalorder %v562, 2000
        %vm567 = vcmp.lt.s32.totalorder %v563, 2000
        %vm568 = vcmp.lt.s32.totalorder %v564, 2000
        %v569 = vsel %vm565, %v548, -inf
        %v570 = vsel %vm566, %v549, -inf
        %v571 = vsel %vm567, %v550, -inf
        %v572 = vsel %vm568, %v551, -inf
        %v573 = vmax.f32 %v569, %v570
        %v574 = vmax.f32 %v571, %v572
        %v575 = vmax.f32 %v573, %v574
        %576 = vmax.xlane.f32.xlu0 %v575
        %v577 = vpop.xlane.xlu0 %576
        %vm578 = vcmp.eq.f32.partialorder %v569, %v577
        %vm579 = vcmp.eq.f32.partialorder %v570, %v577
        %vm580 = vcmp.eq.f32.partialorder %v571, %v577
        %vm581 = vcmp.eq.f32.partialorder %v572, %v577
        %v582 = vsel %vm578, %v561, 1073741824
        %v583 = vsel %vm579, %v562, 1073741824
        %v584 = vsel %vm580, %v563, 1073741824
        %v585 = vsel %vm581, %v564, 1073741824
        %vm586 = vcmp.lt.s32.totalorder %v582, %v583
        %v587 = vsel %vm586, %v582, %v583
        %vm588 = vcmp.lt.s32.totalorder %v584, %v585
        %v589 = vsel %vm588, %v584, %v585
        %vm590 = vcmp.lt.s32.totalorder %v587, %v589
        %v591 = vsel %vm590, %v587, %v589
        %v592 = vand.u32 %v591, 65535
        %v593 = vshra.s32 %v591, 16
        %v594 = vcvt.s32.f32 %v592
        %v595 = vcvt.s32.f32 %v593
        %596 = vmin.xlane.f32.xlu0 %v595
        %v597 = vpop.xlane.xlu0 %596
        %vm598 = vcmp.eq.f32.partialorder %v595, %v597
        %v599 = vsel %vm598, %v594, inf
        %600 = vmin.xlane.f32.xlu0 %v599
        %v601 = vpop.xlane.xlu0 %600
        %v602 = vcvt.f32.s32 %v601
        %v603 = vcvt.f32.s32 %v597
        %v604 = vshll.u32 %v603, 16
        %v605 = vadd.s32 %v604, %v602
        %v606 = vld [vmem:[#allocation2] sm:$0xff]
        %vm607 = vcmp.gt.f32.partialorder %v577, %v606
        %v608 = vld [vmem:[#allocation3] sm:$0xff]
        %v609 = vsel %vm607, %v605, %v608
        %vm610 = vcmask 7168
        %611 = vst.msk [vmem:[#allocation3] sm:$0xff] %vm610, %v609
        %v612 = vld [vmem:[#allocation2] sm:$0xff]
        %v613 = vsel %vm607, %v577, %v612
        %614 = vst.msk [vmem:[#allocation2] sm:$0xff] %vm610, %v613
        %p615 = scmp.eq.s32.totalorder %s29, 1
        // Predicated region
        $region57: #{tpu_custom_call.1} parent=35 // pred_check
          %p616 = pneg %p615
        $region58: #{tpu_custom_call.1} parent=35 // pred_check_branch
          %618 = sbr.rel (%p616) target = $region60
        $region59: #{tpu_custom_call.1} parent=35 // pred_region
          %v619 = vld [vmem:[#allocation2] sm:$0xff]
          %620 = vst.msk [vmem:[%s374] sm:$0xff] %vm610, %v619
          %v621 = vld [vmem:[#allocation3] sm:$0xff]
          %622 = vst.msk [vmem:[%s378] sm:$0xff] %vm610, %v621
        $region60: #{tpu_custom_call.1} parent=35 // pred_fallthru
          _
        %p623 = scmp.lt.s32.totalorder %s28, 1
        %s624 = scalar_select %p623, %s28, 1
        %s625 = smul.addr %s624, 8
        %s626 = scalar_lea.vmem %s4, %s625
        %p627 = scmp.lt.s32.totalorder %s28, 1
        %s628 = scalar_select %p627, %s28, 1
        %s629 = smul.addr %s628, 8
        %s630 = scalar_lea.vmem %s5, %s629
        // Predicated region
        $region61: #{tpu_custom_call.1} parent=35 // pred_check
          %p631 = pneg %p165
        $region62: #{tpu_custom_call.1} parent=35 // pred_check_branch
          %633 = sbr.rel (%p631) target = $region64
        $region63: #{tpu_custom_call.1} parent=35 // pred_region
          _
        $region64: #{tpu_custom_call.1} parent=35 // pred_fallthru
          _
        // Predicated region
        $region65: #{tpu_custom_call.1} parent=35 // pred_check
          %p634 = pneg %p191
        $region66: #{tpu_custom_call.1} parent=35 // pred_check_branch
          %636 = sbr.rel (%p634) target = $region68
        $region67: #{tpu_custom_call.1} parent=35 // pred_region
          _
        $region68: #{tpu_custom_call.1} parent=35 // pred_fallthru
          _
      $region36: #{tpu_custom_call.1} parent=5 // pred_fallthru
        _
      %p637 = scmp.le.s32.totalorder 2, %s19
      // Predicated region
      $region69: #{tpu_custom_call.1} parent=5 // pred_check
        %p638 = pneg %p637
      $region70: #{tpu_custom_call.1} parent=5 // pred_check_branch
        %640 = sbr.rel (%p638) target = $region72
      $region71: #{tpu_custom_call.1} parent=5 // pred_region
        %s641 = ssub.s32 %s19, 2
        // Predicated region
        $region73: #{tpu_custom_call.1} parent=71 // pred_check
          %p642 = pneg %p171
        $region74: #{tpu_custom_call.1} parent=71 // pred_check_branch
          %644 = sbr.rel (%p642) target = $region76
        $region75: #{tpu_custom_call.1} parent=71 // pred_region
          %p645 = scmp.lt.s32.totalorder %s30, 1
          %s646 = scalar_select %p645, %s30, 1
          %s647 = smul.addr %s646, 8
          %s648 = scalar_lea.vmem %s4, %s647
        $region76: #{tpu_custom_call.1} parent=71 // pred_fallthru
          _
        // Predicated region
        $region77: #{tpu_custom_call.1} parent=71 // pred_check
          %p649 = pneg %p197
        $region78: #{tpu_custom_call.1} parent=71 // pred_check_branch
          %651 = sbr.rel (%p649) target = $region80
        $region79: #{tpu_custom_call.1} parent=71 // pred_region
          %p652 = scmp.lt.s32.totalorder %s30, 1
          %s653 = scalar_select %p652, %s30, 1
          %s654 = smul.addr %s653, 8
          %s655 = scalar_lea.vmem %s5, %s654
        $region80: #{tpu_custom_call.1} parent=71 // pred_fallthru
          _
      $region72: #{tpu_custom_call.1} parent=5 // pred_fallthru
        _
    $region6: #{tpu_custom_call.1} parent=1 // loop_footer
      %s23 = sadd.s32 1, %s19
    $region7: #{tpu_custom_call.1} parent=1 // loop_footer_branch
      %18 = sbr.rel target = $region3
    $region8: #{tpu_custom_call.1} parent=1 // loop_exit
      _
    %656 = vsyncpa [#allocation5], 1
    %s657 = scalar_lea.sflag [#allocation5], 1
    %658 = vsyncpa %s657, 1
    %659 = vsyncpa [#allocation7], 1
    %s660 = scalar_lea.sflag [#allocation7], 1
    %661 = vsyncpa %s660, 1
    %662 = vsyncpa [#allocation10], 1
    %s663 = scalar_lea.sflag [#allocation10], 1
    %664 = vsyncpa %s663, 1

</llo_original>
